<compile_context>
chip_gen: v5e
topology: v5e:2x2
jax: 0.10.0
libtpu: 0.0.40
codegen_flags: <defaults>
</compile_context>

<pallas_src>
import functools

import jax
import jax.numpy as jnp
from jax import lax
from jax.experimental import pallas as pl
from jax.experimental.pallas import tpu as pltpu


def _round_up(v, m):
    return ((v + m - 1) // m) * m


def frc_mlp_kernel(x_ref, w1_ref, b1_ref, w2_ref, b2_ref, o_ref, *, use_vpu_head):
    # x_ref : (tm, F)  native layout (bf16)
    # w1_ref: (H, F)   (bf16)            b1_ref: (H, 1) f32
    # w2_ref: (H, 1) f32 if use_vpu_head else (O, H) bf16
    # b2_ref: (O, 1) f32                 o_ref : (O, tm) f32 (feature-major, lane-dense)
    x = x_ref[...]
    # trans-B matmul: contract the feature dims of W1 and x -> (H, tm), f32 acc.
    h = lax.dot_general(
        w1_ref[...], x,
        dimension_numbers=(((1,), (1,)), ((), ())),
        preferred_element_type=jnp.float32,
    )
    h = jnp.maximum(h + b1_ref[...], 0.0)  # bias bcast over lanes + ReLU, f32

    if use_vpu_head:
        # O == 1: VPU broadcast-multiply + XLU sublane reduction; skip the MXU.
        y = jnp.sum(w2_ref[...] * h, axis=0, keepdims=True)        # (1, tm)
    else:
        y = jnp.dot(w2_ref[...], h.astype(w2_ref.dtype),
                    preferred_element_type=jnp.float32)            # (O, tm)

    o_ref[...] = (y + b2_ref[...]).astype(o_ref.dtype)


@functools.partial(jax.jit, static_argnames=("block_batch",))
def frc_mlp_forward(x, w1, b1, w2, b2, *, block_batch=None):
    """Fused MLP forward.  x: (N, F); weights/biases in PyTorch nn.Linear layout:
    w1: (H, F), b1: (H,), w2: (O, H), b2: (O,).  Returns (N, O) in x.dtype."""
    N, F = x.shape
    H = w1.shape[0]
    O = w2.shape[0]
    out_dtype = x.dtype

    # ---- batch tile selection -------------------------------------------------
    if block_batch is not None:
        tm = min(block_batch, N)
        if tm < N:
            tm = _round_up(tm, 128)       # lane-divisibility rule for multi-step grids
    elif N < 512:
        tm = N                            # single step: block == full extent, no padding
    else:
        # >= 2 steps so the "parallel" axis can shard across v7x's two TensorCores;
        # tm lane-aligned and <= 1024 to bound padding and amortize per-step overhead.
        k = max(2, pl.cdiv(N, 1024))
        tm = _round_up(pl.cdiv(N, k), 128)

    n_pad = pl.cdiv(N, tm) * tm
    num_steps = n_pad // tm

    x_in = x
    if n_pad != N:
        x_in = jnp.pad(x, ((0, n_pad - N), (0, 0)))

    # ---- dtype handling: bf16 operands on the MXU, f32 accumulation/bias ------
    x_bf = x_in.astype(jnp.bfloat16)
    w1_bf = w1.astype(jnp.bfloat16)
    b1c = b1.astype(jnp.float32).reshape(H, 1)
    b2c = b2.astype(jnp.float32).reshape(O, 1)

    use_vpu_head = (O == 1)
    if use_vpu_head:
        w2_in = w2.astype(jnp.float32).reshape(H, 1)   # VPU path stays in f32
        w2_block = (H, 1)
        w2_bytes = H * 4
    else:
        w2_in = w2.astype(jnp.bfloat16)
        w2_block = (O, H)
        w2_bytes = O * H * 2

    # ---- VMEM budget (double-buffered streams + resident weights + headroom) --
    bytes_streams = 2 * (tm * F * 2) + 2 * (O * tm * 4)   # x tiles + out tiles
    bytes_weights = H * F * 2 + H * 4 + w2_bytes + O * 4
    bytes_h = H * tm * 4
    vmem_bytes = int(min(48 << 20,
                         max(4 << 20, 2 * (bytes_streams + bytes_weights + bytes_h))))

    cost = pl.CostEstimate(
        flops=2 * N * (F * H + H * O),
        transcendentals=0,
        bytes_accessed=(N * F * 2 + H * F * 2 + H * 4 + w2_bytes + O * 4 + N * O * 4),
    )

    out_t = pl.pallas_call(
        functools.partial(frc_mlp_kernel, use_vpu_head=use_vpu_head),
        out_shape=jax.ShapeDtypeStruct((O, n_pad), out_dtype),
        grid_spec=pltpu.PrefetchScalarGridSpec(
            num_scalar_prefetch=0,
            grid=(num_steps,),
            in_specs=[
                pl.BlockSpec((tm, F), lambda i: (i, 0)),     # x tile, native layout
                pl.BlockSpec((H, F), lambda i: (0, 0)),      # W1 (resident)
                pl.BlockSpec((H, 1), lambda i: (0, 0)),      # b1
                pl.BlockSpec(w2_block, lambda i: (0, 0)),    # W2 / w2 column (resident)
                pl.BlockSpec((O, 1), lambda i: (0, 0)),      # b2
            ],
            out_specs=pl.BlockSpec((O, tm), lambda i: (0, i)),   # lane-dense over batch
        ),
        compiler_params=pltpu.CompilerParams(
            dimension_semantics=("parallel",),
            vmem_limit_bytes=vmem_bytes),
        cost_estimate=cost,
    )(x_bf, w1_bf, b1c, w2_in, b2c)

    if O == 1:
        return out_t[0, :N].reshape(N, 1)     # no transpose needed
    return out_t[:, :N].T


def init_params(key, input_features, hidden_features, output_dimension,
                dtype=jnp.float32):
    """nn.Linear-style init: weights (out, in), U(-1/sqrt(fan_in), 1/sqrt(fan_in))."""
    k1, k2, k3, k4 = jax.random.split(key, 4)
    bound1 = 1.0 / jnp.sqrt(jnp.float32(input_features))
    bound2 = 1.0 / jnp.sqrt(jnp.float32(hidden_features))
    w1 = jax.random.uniform(k1, (hidden_features, input_features),
                            minval=-bound1, maxval=bound1, dtype=dtype)
    b1 = jax.random.uniform(k2, (hidden_features,),
                            minval=-bound1, maxval=bound1, dtype=dtype)
    w2 = jax.random.uniform(k3, (output_dimension, hidden_features),
                            minval=-bound2, maxval=bound2, dtype=dtype)
    b2 = jax.random.uniform(k4, (output_dimension,),
                            minval=-bound2, maxval=bound2, dtype=dtype)
    return w1, b1, w2, b2


def _reference(x, w1, b1, w2, b2):
    # Pure-JAX f32 reference of the forward semantics (nn.Linear: x @ W.T + b).
    return jnp.maximum(x @ w1.T + b1, 0.0) @ w2.T + b2


if __name__ == "__main__":
    input_features = 16
    hidden_features = 32
    output_dimension = 1

    key = jax.random.PRNGKey(0)
    kx, kp, kx2 = jax.random.split(key, 3)
    w1, b1, w2, b2 = init_params(kp, input_features, hidden_features,
                                 output_dimension)

    # Small batch: single-grid-step path.
    batch = 64
    x = jax.random.normal(kx, (batch, input_features), dtype=jnp.float32)
    out = jax.block_until_ready(frc_mlp_forward(x, w1, b1, w2, b2))
    ref = _reference(x, w1, b1, w2, b2)
    assert out.shape == (batch, output_dimension)
    # bf16 operands with f32 accumulation -> loosened tolerance.
    assert jnp.allclose(out, ref, atol=2e-2, rtol=2e-2)

    # Ragged larger batch: multi-step, lane-aligned, padded path (tm=384, 2 steps).
    batch2 = 640
    x2 = jax.random.normal(kx2, (batch2, input_features), dtype=jnp.float32)
    out2 = jax.block_until_ready(frc_mlp_forward(x2, w1, b1, w2, b2))
    ref2 = _reference(x2, w1, b1, w2, b2)
    assert out2.shape == (batch2, output_dimension)
    assert jnp.allclose(out2, ref2, atol=2e-2, rtol=2e-2)

    # TODO(synk): the .fit() training loop (Adam + MSE + early stopping) is host-side
    # training logic, not part of the forward pass, and is not implemented as a kernel.

    print("KERNEL_OK")
</pallas_src>

<mosaic_0001>
module attributes {stable_mosaic.version = 11 : i64} {
  func.func @frc_mlp_kernel(%arg0: i32, %arg1: memref<64x16xbf16, #tpu.memory_space<vmem>>, %arg2: memref<32x16xbf16, #tpu.memory_space<vmem>>, %arg3: memref<32x1xf32, #tpu.memory_space<vmem>>, %arg4: memref<32x1xf32, #tpu.memory_space<vmem>>, %arg5: memref<1x1xf32, #tpu.memory_space<vmem>>, %arg6: memref<1x64xf32, #tpu.memory_space<vmem>>) attributes {dimension_semantics = [#tpu.dimension_semantics<parallel>], iteration_bounds = array<i64: 1>, scalar_prefetch = 0 : i64, scratch_operands = 0 : i64, tpu.core_type = #tpu.core_type<tc>, window_params = [{transform_indices = @transform_0, window_bounds = array<i64: 64, 16>}, {pipeline_mode = #tpu.pipeline_mode<synchronous>, transform_indices = @transform_1, window_bounds = array<i64: 32, 16>}, {pipeline_mode = #tpu.pipeline_mode<synchronous>, transform_indices = @transform_2, window_bounds = array<i64: 32, 1>}, {pipeline_mode = #tpu.pipeline_mode<synchronous>, transform_indices = @transform_3, window_bounds = array<i64: 32, 1>}, {pipeline_mode = #tpu.pipeline_mode<synchronous>, transform_indices = @transform_4, window_bounds = array<i64: 1, 1>}, {transform_indices = @transform_5, window_bounds = array<i64: 1, 64>}]} {
    %c0 = arith.constant 0 : index
    %c0_0 = arith.constant 0 : index
    %0 = vector.load %arg1[%c0, %c0_0] : memref<64x16xbf16, #tpu.memory_space<vmem>>, vector<64x16xbf16>
    %c0_1 = arith.constant 0 : index
    %c0_2 = arith.constant 0 : index
    %1 = vector.load %arg2[%c0_1, %c0_2] : memref<32x16xbf16, #tpu.memory_space<vmem>>, vector<32x16xbf16>
    %cst = arith.constant dense<0.000000e+00> : vector<32x64xf32>
    %2 = tpu.matmul %1, %0, %cst {dimension_numbers = #tpu.dot_dimension_numbers<[1], [1], [0], [0], [0, 0, 1, 0], [], []>} : vector<32x16xbf16>, vector<64x16xbf16>, vector<32x64xf32> -> vector<32x64xf32>
    %c0_3 = arith.constant 0 : index
    %c0_4 = arith.constant 0 : index
    %3 = vector.load %arg3[%c0_3, %c0_4] : memref<32x1xf32, #tpu.memory_space<vmem>>, vector<32x1xf32>
    %4 = vector.broadcast %3 : vector<32x1xf32> to vector<32x64xf32>
    %5 = arith.addf %2, %4 : vector<32x64xf32>
    %cst_5 = arith.constant 0.000000e+00 : f32
    %6 = vector.broadcast %cst_5 : f32 to vector<32x64xf32>
    %7 = arith.maximumf %5, %6 : vector<32x64xf32>
    %c0_6 = arith.constant 0 : index
    %c0_7 = arith.constant 0 : index
    %8 = vector.load %arg4[%c0_6, %c0_7] : memref<32x1xf32, #tpu.memory_space<vmem>>, vector<32x1xf32>
    %9 = vector.broadcast %8 : vector<32x1xf32> to vector<32x64xf32>
    %10 = arith.mulf %9, %7 : vector<32x64xf32>
    %cst_8 = arith.constant dense<0.000000e+00> : vector<64xf32>
    %11 = vector.multi_reduction <add>, %10, %cst_8 [0] : vector<32x64xf32> to vector<64xf32>
    %12 = vector.shape_cast %11 : vector<64xf32> to vector<1x64xf32>
    %c0_9 = arith.constant 0 : index
    %c0_10 = arith.constant 0 : index
    %13 = vector.load %arg5[%c0_9, %c0_10] : memref<1x1xf32, #tpu.memory_space<vmem>>, vector<1x1xf32>
    %14 = vector.broadcast %13 : vector<1x1xf32> to vector<1x64xf32>
    %15 = arith.addf %12, %14 : vector<1x64xf32>
    %c0_11 = arith.constant 0 : index
    %c0_12 = arith.constant 0 : index
    %16 = vector.load %arg6[%c0_11, %c0_12] : memref<1x64xf32, #tpu.memory_space<vmem>>, vector<1x64xf32>
    tpu.vector_store %arg6[%c0_11, %c0_12], %15 {strides = array<i32>} : memref<1x64xf32, #tpu.memory_space<vmem>>, vector<1x64xf32>,
    return
  }
  func.func @transform_0(%arg0: i32) -> (i32, i32) {
    %c0_i32 = arith.constant 0 : i32
    %c0_i32_0 = arith.constant 0 : i32
    return %arg0, %c0_i32 : i32, i32
  }
  func.func @transform_1(%arg0: i32) -> (i32, i32) {
    %c0_i32 = arith.constant 0 : i32
    %c0_i32_0 = arith.constant 0 : i32
    %c0_i32_1 = arith.constant 0 : i32
    return %c0_i32, %c0_i32_0 : i32, i32
  }
  func.func @transform_2(%arg0: i32) -> (i32, i32) {
    %c0_i32 = arith.constant 0 : i32
    %c0_i32_0 = arith.constant 0 : i32
    %c0_i32_1 = arith.constant 0 : i32
    return %c0_i32, %c0_i32_0 : i32, i32
  }
  func.func @transform_3(%arg0: i32) -> (i32, i32) {
    %c0_i32 = arith.constant 0 : i32
    %c0_i32_0 = arith.constant 0 : i32
    %c0_i32_1 = arith.constant 0 : i32
    return %c0_i32, %c0_i32_0 : i32, i32
  }
  func.func @transform_4(%arg0: i32) -> (i32, i32) {
    %c0_i32 = arith.constant 0 : i32
    %c0_i32_0 = arith.constant 0 : i32
    %c0_i32_1 = arith.constant 0 : i32
    return %c0_i32, %c0_i32_0 : i32, i32
  }
  func.func @transform_5(%arg0: i32) -> (i32, i32) {
    %c0_i32 = arith.constant 0 : i32
    %c0_i32_0 = arith.constant 0 : i32
    return %c0_i32, %arg0 : i32, i32
  }
}

</mosaic_0001>

<llo_original>
// kernel: frc_mlp_forward.1
$region0: #{frc_mlp_forward.1}
  #allocation0 [shape = 'u32[]', space=smem, size = 0x4, offset = 0x4, fixed_abs, tag = 'smem constant byte address 0x4 - core index']
  #allocation1 [shape = 'u32[72,128]{1,0:T(1,128)}', space=vmem, size = 0x9000, scoped, tag = 'internal scratch']
  #allocation2 [shape = 'f32[1,1]{1,0:T(1,128)S(1)}', space=vmem, size = 0x200, scoped, tag = 'scoped memory for frc_mlp_forward.1']
  %s0 = inlined_call_operand.vmem [shape: bf16[64,16], index: 0, kind: input, shape index: {}]
  %s1 = inlined_call_operand.vmem [shape: bf16[32,16], index: 1, kind: input, shape index: {}]
  %s2 = inlined_call_operand.vmem [shape: f32[32,1], index: 2, kind: input, shape index: {}]
  %s3 = inlined_call_operand.vmem [shape: f32[32,1], index: 3, kind: input, shape index: {}]
  %s4 = inlined_call_operand.<no memory space> [shape: f32[1,1], index: 4, kind: input, shape index: {}]
  %s5 = inlined_call_operand.hbm [shape: f32[1,64], index: 5, kind: output, shape index: {}]
  %s6 = sld [smem:[#allocation0]]
  $region30: #{frc_mlp_forward.1} parent=0
    _
  %s8 = ssub.s32 1, %s6
  %s9 = scalar_select 0, %s8, %s6
  %v10 = vstv %s4
  %11 = vst [vmem:[#allocation2] sm:$0x1] %v10
  $region1: #{frc_mlp_forward.1} parent=0
    #allocation3 [shape = 'u8[512]{0}', space=vmem, size = 0x400, scoped, tag = 'output window, operand 0, single buffered']
    #allocation4 [shape = 's32[1]{0}', space=sflag, size = 0x4, scoped, tag = 'scoped memory for frc_mlp_forward.1']
    %12 = vsyncpa [#allocation4], 0
    // Predicated region
    $region2: #{frc_mlp_forward.1} parent=1 // pred_check
      _
    $region3: #{frc_mlp_forward.1} parent=1 // pred_check_branch
      %14 = sbr.rel (0) target = $region5
    $region4: #{frc_mlp_forward.1} parent=1 // pred_region
      _
    $region5: #{frc_mlp_forward.1} parent=1 // pred_fallthru
      _
    // Predicated region
    $region6: #{frc_mlp_forward.1} parent=1 // pred_check
      _
    $region7: #{frc_mlp_forward.1} parent=1 // pred_check_branch
      %16 = sbr.rel (0) target = $region9
    $region8: #{frc_mlp_forward.1} parent=1 // pred_region
      _
    $region9: #{frc_mlp_forward.1} parent=1 // pred_fallthru
      _
    // Predicated region
    $region10: #{frc_mlp_forward.1} parent=1 // pred_check
      _
    $region11: #{frc_mlp_forward.1} parent=1 // pred_check_branch
      %18 = sbr.rel (0) target = $region13
    $region12: #{frc_mlp_forward.1} parent=1 // pred_region
      _
    $region13: #{frc_mlp_forward.1} parent=1 // pred_fallthru
      _
    // Predicated region
    $region14: #{frc_mlp_forward.1} parent=1 // pred_check
      _
    $region15: #{frc_mlp_forward.1} parent=1 // pred_check_branch
      %20 = sbr.rel (0) target = $region17
    $region16: #{frc_mlp_forward.1} parent=1 // pred_region
      _
    $region17: #{frc_mlp_forward.1} parent=1 // pred_fallthru
      _
    // Predicated region
    $region18: #{frc_mlp_forward.1} parent=1 // pred_check
      _
    $region19: #{frc_mlp_forward.1} parent=1 // pred_check_branch
      %22 = sbr.rel (0) target = $region21
    $region20: #{frc_mlp_forward.1} parent=1 // pred_region
      _
    $region21: #{frc_mlp_forward.1} parent=1 // pred_fallthru
      _
    %v24 = vld [vmem:[%s0] sm:$0xf]
    %v25 = vld [vmem:[%s0 + $0x4] sm:$0xf]
    %v26 = vld [vmem:[%s0 + $0x8] sm:$0xf]
    %v27 = vld [vmem:[%s0 + $0xc] sm:$0xf]
    %v28 = vld [vmem:[%s0 + $0x10] sm:$0xf]
    %v29 = vld [vmem:[%s0 + $0x14] sm:$0xf]
    %v30 = vld [vmem:[%s0 + $0x18] sm:$0xf]
    %v31 = vld [vmem:[%s0 + $0x1c] sm:$0xf]
    %v32 = vld [vmem:[%s1] sm:$0xf]
    %v33 = vld [vmem:[%s1 + $0x4] sm:$0xf]
    %v34 = vld [vmem:[%s1 + $0x8] sm:$0xf]
    %v35 = vld [vmem:[%s1 + $0xc] sm:$0xf]
    %v36 = vld [vmem:[%s2] sm:$0xff]
    %v37 = vld [vmem:[%s2 + $0x8] sm:$0xff]
    %v38 = vld [vmem:[%s2 + $0x10] sm:$0xff]
    %v39 = vld [vmem:[%s2 + $0x18] sm:$0xff]
    %41 = vset.pattern.permute.xlu0 0
    %42 = vperm.xlu0 %41, %v36
    %v43 = vpop.permute.xlu0 %42
    %46 = vset.pattern.permute.xlu0 0
    %47 = vperm.xlu0 %46, %v37
    %v48 = vpop.permute.xlu0 %47
    %51 = vset.pattern.permute.xlu0 0
    %52 = vperm.xlu0 %51, %v38
    %v53 = vpop.permute.xlu0 %52
    %56 = vset.pattern.permute.xlu0 0
    %57 = vperm.xlu0 %56, %v39
    %v58 = vpop.permute.xlu0 %57
    %v64 = vunpack.c.l.b16 %v32
    %v65 = vunpack.c.l.b16 %v33
    %v66 = vunpack.c.l.b16 %v34
    %v67 = vunpack.c.l.b16 %v35
    %v68 = vpack.c.b16 %v65, %v64
    %v69 = vpack.c.b16 %v67, %v66
    %v78 = vunpack.c.l.b16 %v24
    %v79 = vunpack.c.l.b16 %v25
    %v80 = vunpack.c.l.b16 %v26
    %v81 = vunpack.c.l.b16 %v27
    %v82 = vunpack.c.l.b16 %v28
    %v83 = vunpack.c.l.b16 %v29
    %v84 = vunpack.c.l.b16 %v30
    %v85 = vunpack.c.l.b16 %v31
    %v86 = vpack.c.b16 %v79, %v78
    %v87 = vpack.c.b16 %v81, %v80
    %v88 = vpack.c.b16 %v83, %v82
    %v89 = vpack.c.b16 %v85, %v84
    %vm90 = vcmask 130048
    %v92 = vsel %vm90, %v68, 0
    %v95 = vsel %vm90, %v69, 0
    %v98 = vsel %vm90, %v86, 0
    %v101 = vsel %vm90, %v87, 0
    %v104 = vsel %vm90, %v88, 0
    %v107 = vsel %vm90, %v89, 0
    %109 = vmatpush.bf16.xpose.msra.mxu0 0
    %110 = vmatpush.bf16.xpose.msra.mxu0 0
    %111 = vmatpush.bf16.xpose.msra.mxu0 0
    %112 = vmatpush.bf16.xpose.msra.mxu0 0
    %113 = vmatpush.bf16.xpose.msra.mxu0 %v107
    %114 = vmatpush.bf16.xpose.msra.mxu0 %v104
    %115 = vmatpush.bf16.xpose.msra.mxu0 %v101
    %116 = vmatpush.bf16.xpose.msra.mxu0 %v98
    %117 = vmatmul.bf16.gmra.mxu0 %v92
    %v118 = vpop.f32.mrf.mxu0
    %v119 = vadd.f32 %v43, %v118
    %v120 = vpop.f32.mrf.mxu0
    %v121 = vadd.f32 %v48, %v120
    %122 = vmatmul.bf16.gmra.mxu0 %v95
    %v123 = vpop.f32.mrf.mxu0
    %v124 = vadd.f32 %v53, %v123
    %v125 = vpop.f32.mrf.mxu0
    %v126 = vadd.f32 %v58, %v125
    %127 = vdwg.mxu0
    %v128 = vmax.f32 %v119, 0.0
    %v129 = vmax.f32 %v121, 0.0
    %v130 = vmax.f32 %v124, 0.0
    %v131 = vmax.f32 %v126, 0.0
    %v132 = vld [vmem:[%s3] sm:$0xff]
    %v133 = vld [vmem:[%s3 + $0x8] sm:$0xff]
    %v134 = vld [vmem:[%s3 + $0x10] sm:$0xff]
    %v135 = vld [vmem:[%s3 + $0x18] sm:$0xff]
    %137 = vset.pattern.permute.xlu0 0
    %138 = vperm.xlu0 %137, %v132
    %v139 = vpop.permute.xlu0 %138
    %142 = vset.pattern.permute.xlu0 0
    %143 = vperm.xlu0 %142, %v133
    %v144 = vpop.permute.xlu0 %143
    %147 = vset.pattern.permute.xlu0 0
    %148 = vperm.xlu0 %147, %v134
    %v149 = vpop.permute.xlu0 %148
    %152 = vset.pattern.permute.xlu0 0
    %153 = vperm.xlu0 %152, %v135
    %v154 = vpop.permute.xlu0 %153
    %v156 = vmul.f32 %v139, %v128
    %v157 = vmul.f32 %v144, %v129
    %v158 = vmul.f32 %v149, %v130
    %v159 = vmul.f32 %v154, %v131
    %vm160 = vcmask 523264
    %v161 = vsel %vm160, %v156, 0.0
    %v162 = vsel %vm160, %v157, 0.0
    %v163 = vadd.f32 %v161, %v162
    %v164 = vsel %vm160, %v158, 0.0
    %v165 = vadd.f32 %v163, %v164
    %v166 = vsel %vm160, %v159, 0.0
    %v167 = vadd.f32 %v165, %v166
    %v168 = vrot.slane %v167, 4
    %v169 = vadd.f32 %v167, %v168
    %v170 = vrot.slane %v169, 2
    %v171 = vadd.f32 %v169, %v170
    %v172 = vrot.slane %v171, 1
    %v173 = vadd.f32 %v171, %v172
    %v174 = vld [vmem:[#allocation2] sm:$0x1]
    %176 = vset.pattern.permute.xlu0 0
    %177 = vperm.xlu0 %176, %v174
    %v178 = vpop.permute.xlu0 %177
    %v180 = vperm.slane %v178, 0
    %v181 = vadd.f32 %v173, %v180
    %vm182 = vcmask 516096
    %183 = vst.msk [vmem:[#allocation3] sm:$0x1] %vm182, %v181
    // Predicated region
    $region22: #{frc_mlp_forward.1} parent=1 // pred_check
      _
    $region23: #{frc_mlp_forward.1} parent=1 // pred_check_branch
      %185 = sbr.rel (0) target = $region25
    $region24: #{frc_mlp_forward.1} parent=1 // pred_region
      %187 = vsyncadd [#allocation4], 0
      %s189 = sshll.u32 [#allocation3], 4
      %s190 = int_to_ptr.vmem [resolvable:$true] %s189
      %s191 = sshll.u32 %s5, 4
      %s192 = int_to_ptr.hbm [resolvable:$true] %s191
      %194 = dma.vmem_to_hbm [thread:$0]  %s190, 16, %s192, [#allocation4]
    $region25: #{frc_mlp_forward.1} parent=1 // pred_fallthru
      _
    // Predicated region
    $region26: #{frc_mlp_forward.1} parent=1 // pred_check
      _
    $region27: #{frc_mlp_forward.1} parent=1 // pred_check_branch
      %196 = sbr.rel (0) target = $region29
    $region28: #{frc_mlp_forward.1} parent=1 // pred_region
      %198 = dma.done [#allocation4], 16
    $region29: #{frc_mlp_forward.1} parent=1 // pred_fallthru
      _
    %199 = vsyncpa [#allocation4], 1

</llo_original>
